<compile_context>
chip_gen: v5e
topology: v5e:2x2
jax: 0.10.0
libtpu: 0.0.40
codegen_flags: <defaults>
</compile_context>

<pallas_src>
import functools

import jax
import jax.numpy as jnp
from jax.experimental import pallas as pl
from jax.experimental.pallas import tpu as pltpu

_MIB = 1 << 20


def _round_up(n, m):
    return ((n + m - 1) // m) * m


def _physical_vmem_bytes():
    # Conservative fallback = v7x's 64 MiB per-TensorCore VMEM.
    try:
        info = pltpu.get_tpu_info()
        cap = getattr(info, "vmem_capacity_bytes", None)
        if cap:
            return int(cap)
    except Exception:
        pass
    return 64 * _MIB


def _pack_granularity(itemsize):
    # Sub-32-bit dtypes pack rows along sublanes: 2/sublane for bf16, 4 for fp8.
    return {4: 8, 2: 16, 1: 32}.get(int(itemsize), 8)


def _tile_vmem_bytes(bt, padded, in_itemsize):
    """Approximate resident VMEM for one pipelined grid step."""
    n_layers = len(padded) - 1
    w_bytes = sum(padded[k] * padded[k + 1]
                  for k in range(n_layers)) * in_itemsize      # single-buffered
    x_bytes = 2 * bt * padded[0] * in_itemsize                 # dbl-buffered x tile
    o_bytes = 2 * bt * padded[-1] * 4                          # dbl-buffered f32 out tile
    h_bytes = 2 * bt * max(padded) * 4                         # live f32 intermediates
    return w_bytes + x_bytes + o_bytes + h_bytes


def _choose_batch_tile(batch, batch_tile, padded, itemsize, budget):
    g = _pack_granularity(itemsize)
    batch_g = _round_up(batch, g)
    # Largest tile that still yields >=2 grid steps (keeps both v7x TensorCores
    # busy via the 'parallel' batch axis) whenever the batch allows it.
    cap = max(g, _round_up((batch_g + 1) // 2, g))
    cap = min(cap, _round_up(min(batch_tile, batch_g), g))
    bt = cap
    # Shrink until the per-step VMEM footprint fits the budget.
    while bt > g and _tile_vmem_bytes(bt, padded, itemsize) > budget:
        bt = max(g, _round_up(bt // 2, g))
    return bt


def _weight_block_spec(shape):
    # Constant index_map -> the weight tile is DMA'd once and stays VMEM
    # resident across the whole grid.  Single-buffer it: double-buffering a
    # never-changing block only doubles its VMEM footprint.
    try:
        return pl.BlockSpec(shape, lambda i: (0, 0), pipeline_mode=pl.Buffered(1))
    except TypeError:  # older jax without pipeline_mode kwarg
        return pl.BlockSpec(shape, lambda i: (0, 0))


def _dag_kernel(n_layers, *refs):
    # refs = (x_ref, w0_ref, ..., w{n-1}_ref, out_ref)
    x_ref = refs[0]
    w_refs = refs[1:1 + n_layers]
    o_ref = refs[1 + n_layers]

    h = x_ref[...]
    for w_ref in w_refs:
        # Weights are pre-transposed to (in, out): y = h @ W_t.
        # Cast keeps the MXU fed with matching operand dtype (e.g. bf16);
        # accumulation stays f32 via preferred_element_type.
        lhs = h if h.dtype == w_ref.dtype else h.astype(w_ref.dtype)
        h = jnp.dot(lhs, w_ref[...], preferred_element_type=jnp.float32)
    o_ref[...] = h.astype(o_ref.dtype)


def prepare_dag_weights(weights, *, mxu_dtype=jnp.bfloat16, collapse=False):
    """Transpose (out,in)->(in,out), zero-pad features to 128 lanes, cast once.

    Call this once per weight set and reuse the result across forward calls;
    re-laying-out weights inside every call doubles HBM traffic for what is
    otherwise a memory-bound chain.  Zero-padding is exact for bias-free
    linears.  With collapse=True the whole chain is pre-multiplied into a
    single (in, out) matrix (use only when weights are static across calls).
    """
    ws = [jnp.asarray(w, jnp.float32) for w in weights]
    dims = [ws[0].shape[1]] + [w.shape[0] for w in ws]
    if collapse:
        wt_all = ws[0].T
        for w in ws[1:]:
            wt_all = wt_all @ w.T
        ws_t = [wt_all]
        dims = [dims[0], dims[-1]]
    else:
        ws_t = [w.T for w in ws]

    padded = [_round_up(d, 128) for d in dims]
    wts = []
    for k, wt in enumerate(ws_t):
        wt = jnp.pad(wt, ((0, padded[k] - wt.shape[0]),
                          (0, padded[k + 1] - wt.shape[1])))
        wts.append(wt.astype(mxu_dtype))
    return tuple(wts), tuple(dims), tuple(padded)


def dag_forward_prepared(x, prepared, *, batch_tile=1024):
    """Run the DAG forward chain with weights already prepared."""
    wts, dims, padded = prepared
    n_layers = len(wts)
    batch, in_dim = x.shape
    assert in_dim == dims[0], "input feature dim mismatch"
    out_dim = dims[-1]

    mxu_dtype = wts[0].dtype
    itemsize = jnp.dtype(mxu_dtype).itemsize

    physical_vmem = _physical_vmem_bytes()
    budget = min(int(physical_vmem * 0.75), 100 * _MIB)

    # TODO(synk): if the resident weight chain alone exceeds `budget` (e.g. on
    # v7x's 64 MiB VMEM), stream weights per layer (layer grid axis or
    # pltpu.emit_pipeline) instead of keeping all layers VMEM-resident.

    bt = _choose_batch_tile(batch, batch_tile, padded, itemsize, budget)
    batch_pad = _round_up(batch, bt)
    nb = batch_pad // bt

    xp = jnp.pad(jnp.asarray(x, jnp.float32),
                 ((0, batch_pad - batch), (0, padded[0] - in_dim)))
    xp = xp.astype(mxu_dtype)

    in_specs = [pl.BlockSpec((bt, padded[0]), lambda i: (i, 0))]
    for w in wts:
        in_specs.append(_weight_block_spec(w.shape))
    out_spec = pl.BlockSpec((bt, padded[-1]), lambda i: (i, 0))

    footprint = _tile_vmem_bytes(bt, padded, itemsize)
    vmem_limit = int(min(max(32 * _MIB, footprint + 4 * _MIB), budget))

    flops = 2 * batch_pad * sum(padded[k] * padded[k + 1]
                                for k in range(n_layers))
    bytes_accessed = (itemsize * (int(xp.size) + sum(int(w.size) for w in wts))
                      + 4 * batch_pad * padded[-1])
    cost = pl.CostEstimate(flops=flops, transcendentals=0,
                           bytes_accessed=bytes_accessed)

    out_pad = pl.pallas_call(
        functools.partial(_dag_kernel, n_layers),
        out_shape=jax.ShapeDtypeStruct((batch_pad, padded[-1]), jnp.float32),
        grid=(nb,),
        in_specs=in_specs,
        out_specs=out_spec,
        compiler_params=pltpu.CompilerParams(
            dimension_semantics=("parallel",),
            vmem_limit_bytes=vmem_limit),
        cost_estimate=cost,
    )(xp, *wts)

    # Slice away the batch / lane padding in the wrapper.
    return out_pad[:batch, :out_dim]


def dag_forward(x, weights, *, batch_tile=1024, mxu_dtype=jnp.bfloat16,
                collapse=False):
    """Convenience wrapper: prepare weights + forward in one call."""
    prepared = prepare_dag_weights(weights, mxu_dtype=mxu_dtype,
                                   collapse=collapse)
    return dag_forward_prepared(x, prepared, batch_tile=batch_tile)


def init_dag_weights(layers_list, key):
    """Deterministic init mimicking nn.Linear default: U(-1/sqrt(in), 1/sqrt(in))."""
    weights = []
    for i in range(len(layers_list) - 1):
        fan_in = layers_list[i]
        fan_out = layers_list[i + 1]
        key, sub = jax.random.split(key)
        bound = 1.0 / (fan_in ** 0.5)
        w = jax.random.uniform(sub, (fan_out, fan_in),
                               minval=-bound, maxval=bound,
                               dtype=jnp.float32)
        weights.append(w)
    return weights


if __name__ == "__main__":
    # Small shapes consistent with DAG(layers_list): batch=8, 3 linear layers.
    layers_list = [32, 64, 48, 16]
    batch = 8

    key = jax.random.PRNGKey(0)
    key, xkey = jax.random.split(key)
    x = jax.random.normal(xkey, (batch, layers_list[0]), dtype=jnp.float32)
    weights = init_dag_weights(layers_list, key)

    # Pure-JAX reference of the forward chain: x @ W0^T @ W1^T @ W2^T.
    ref = x
    for w in weights:
        ref = ref @ w.T

    # 1) Exact f32 MXU-operand path (tight tolerance).
    prep_f32 = prepare_dag_weights(weights, mxu_dtype=jnp.float32)
    out_f32 = jax.block_until_ready(dag_forward_prepared(x, prep_f32))
    assert out_f32.shape == (batch, layers_list[-1])
    assert jnp.allclose(out_f32, ref, atol=1e-4, rtol=1e-4)

    # 2) Default bf16 MXU-operand path (f32 accumulation; looser tolerance —
    #    intended precision trade for 2x+ MXU throughput on v6e/v7x).
    prep_bf16 = prepare_dag_weights(weights)  # bf16 default
    out_bf16 = jax.block_until_ready(dag_forward_prepared(x, prep_bf16))
    assert out_bf16.shape == (batch, layers_list[-1])
    assert jnp.allclose(out_bf16, ref, atol=5e-2, rtol=5e-2)

    print("KERNEL_OK")
</pallas_src>

<mosaic_0001>
module attributes {stable_mosaic.version = 11 : i64} {
  func.func @_dag_kernel(%arg0: i32, %arg1: memref<8x128xf32, #tpu.memory_space<vmem>>, %arg2: memref<128x128xf32, #tpu.memory_space<vmem>>, %arg3: memref<128x128xf32, #tpu.memory_space<vmem>>, %arg4: memref<128x128xf32, #tpu.memory_space<vmem>>, %arg5: memref<8x128xf32, #tpu.memory_space<vmem>>) attributes {dimension_semantics = [#tpu.dimension_semantics<parallel>], iteration_bounds = array<i64: 1>, scalar_prefetch = 0 : i64, scratch_operands = 0 : i64, tpu.core_type = #tpu.core_type<tc>, window_params = [{transform_indices = @transform_0, window_bounds = array<i64: 8, 128>}, {pipeline_mode = #tpu.pipeline_mode<synchronous>, transform_indices = @transform_1, window_bounds = array<i64: 128, 128>}, {pipeline_mode = #tpu.pipeline_mode<synchronous>, transform_indices = @transform_2, window_bounds = array<i64: 128, 128>}, {pipeline_mode = #tpu.pipeline_mode<synchronous>, transform_indices = @transform_3, window_bounds = array<i64: 128, 128>}, {transform_indices = @transform_4, window_bounds = array<i64: 8, 128>}]} {
    %c0 = arith.constant 0 : index
    %c0_0 = arith.constant 0 : index
    %0 = vector.load %arg1[%c0, %c0_0] : memref<8x128xf32, #tpu.memory_space<vmem>>, vector<8x128xf32>
    %c0_1 = arith.constant 0 : index
    %c0_2 = arith.constant 0 : index
    %1 = vector.load %arg2[%c0_1, %c0_2] : memref<128x128xf32, #tpu.memory_space<vmem>>, vector<128x128xf32>
    %cst = arith.constant dense<0.000000e+00> : vector<8x128xf32>
    %2 = tpu.matmul %0, %1, %cst {dimension_numbers = #tpu.dot_dimension_numbers<[1], [0], [0], [1], [0, 0, 1, 1], [], []>} : vector<8x128xf32>, vector<128x128xf32>, vector<8x128xf32> -> vector<8x128xf32>
    %c0_3 = arith.constant 0 : index
    %c0_4 = arith.constant 0 : index
    %3 = vector.load %arg3[%c0_3, %c0_4] : memref<128x128xf32, #tpu.memory_space<vmem>>, vector<128x128xf32>
    %cst_5 = arith.constant dense<0.000000e+00> : vector<8x128xf32>
    %4 = tpu.matmul %2, %3, %cst_5 {dimension_numbers = #tpu.dot_dimension_numbers<[1], [0], [0], [1], [0, 0, 1, 1], [], []>} : vector<8x128xf32>, vector<128x128xf32>, vector<8x128xf32> -> vector<8x128xf32>
    %c0_6 = arith.constant 0 : index
    %c0_7 = arith.constant 0 : index
    %5 = vector.load %arg4[%c0_6, %c0_7] : memref<128x128xf32, #tpu.memory_space<vmem>>, vector<128x128xf32>
    %cst_8 = arith.constant dense<0.000000e+00> : vector<8x128xf32>
    %6 = tpu.matmul %4, %5, %cst_8 {dimension_numbers = #tpu.dot_dimension_numbers<[1], [0], [0], [1], [0, 0, 1, 1], [], []>} : vector<8x128xf32>, vector<128x128xf32>, vector<8x128xf32> -> vector<8x128xf32>
    %c0_9 = arith.constant 0 : index
    %c0_10 = arith.constant 0 : index
    %7 = vector.load %arg5[%c0_9, %c0_10] : memref<8x128xf32, #tpu.memory_space<vmem>>, vector<8x128xf32>
    tpu.vector_store %arg5[%c0_9, %c0_10], %6 {strides = array<i32>} : memref<8x128xf32, #tpu.memory_space<vmem>>, vector<8x128xf32>,
    return
  }
  func.func @transform_0(%arg0: i32) -> (i32, i32) {
    %c0_i32 = arith.constant 0 : i32
    %c0_i32_0 = arith.constant 0 : i32
    return %arg0, %c0_i32 : i32, i32
  }
  func.func @transform_1(%arg0: i32) -> (i32, i32) {
    %c0_i32 = arith.constant 0 : i32
    %c0_i32_0 = arith.constant 0 : i32
    %c0_i32_1 = arith.constant 0 : i32
    return %c0_i32, %c0_i32_0 : i32, i32
  }
  func.func @transform_2(%arg0: i32) -> (i32, i32) {
    %c0_i32 = arith.constant 0 : i32
    %c0_i32_0 = arith.constant 0 : i32
    %c0_i32_1 = arith.constant 0 : i32
    return %c0_i32, %c0_i32_0 : i32, i32
  }
  func.func @transform_3(%arg0: i32) -> (i32, i32) {
    %c0_i32 = arith.constant 0 : i32
    %c0_i32_0 = arith.constant 0 : i32
    %c0_i32_1 = arith.constant 0 : i32
    return %c0_i32, %c0_i32_0 : i32, i32
  }
  func.func @transform_4(%arg0: i32) -> (i32, i32) {
    %c0_i32 = arith.constant 0 : i32
    %c0_i32_0 = arith.constant 0 : i32
    return %arg0, %c0_i32 : i32, i32
  }
}

</mosaic_0001>

<llo_original>
// kernel: tpu_custom_call.1
$region0: #{tpu_custom_call.1}
  #allocation0 [shape = 'u32[]', space=smem, size = 0x4, offset = 0x4, fixed_abs, tag = 'smem constant byte address 0x4 - core index']
  #allocation1 [shape = 'u32[72,128]{1,0:T(1,128)}', space=vmem, size = 0x9000, scoped, tag = 'internal scratch']
  %s0 = inlined_call_operand.hbm [shape: f32[8,128], index: 0, kind: input, shape index: {}]
  %s1 = inlined_call_operand.hbm [shape: f32[128,128], index: 1, kind: input, shape index: {}]
  %s2 = inlined_call_operand.hbm [shape: f32[128,128], index: 2, kind: input, shape index: {}]
  %s3 = inlined_call_operand.hbm [shape: f32[128,128], index: 3, kind: input, shape index: {}]
  %s4 = inlined_call_operand.hbm [shape: f32[8,128], index: 4, kind: output, shape index: {}]
  %s5 = sld [smem:[#allocation0]]
  $region42: #{tpu_custom_call.1} parent=0
    _
  %s7 = ssub.s32 1, %s5
  %s8 = scalar_select 0, %s7, %s5
  $region1: #{tpu_custom_call.1} parent=0
    #allocation2 [shape = 'u8[4096]{0}', space=vmem, size = 0x1000, scoped, tag = 'input window, operand 0, single buffered']
    #allocation3 [shape = 's32[1]{0}', space=sflag, size = 0x4, scoped, tag = 'scoped memory for tpu_custom_call.1']
    #allocation4 [shape = 's32[1]{0}', space=sflag, size = 0x4, scoped, tag = 'scoped memory for tpu_custom_call.1']
    #allocation5 [shape = 'u8[65536]{0}', space=vmem, size = 0x10000, scoped, tag = 'input window, operand 1, single buffered']
    #allocation6 [shape = 's32[1]{0}', space=sflag, size = 0x4, scoped, tag = 'scoped memory for tpu_custom_call.1']
    #allocation7 [shape = 'u8[65536]{0}', space=vmem, size = 0x10000, scoped, tag = 'input window, operand 2, single buffered']
    #allocation8 [shape = 'u8[65536]{0}', space=vmem, size = 0x10000, scoped, tag = 'input window, operand 3, single buffered']
    #allocation9 [shape = 's32[1]{0}', space=sflag, size = 0x4, scoped, tag = 'scoped memory for tpu_custom_call.1']
    #allocation10 [shape = 'u8[4096]{0}', space=vmem, size = 0x1000, scoped, tag = 'output window, operand 0, single buffered']
    %9 = vsyncpa [#allocation3], 0
    %10 = vsyncpa [#allocation6], 0
    %11 = vsyncpa [#allocation9], 0
    %12 = vsyncpa [#allocation4], 0
    // Predicated region
    $region2: #{tpu_custom_call.1} parent=1 // pred_check
      _
    $region3: #{tpu_custom_call.1} parent=1 // pred_check_branch
      %14 = sbr.rel (0) target = $region5
    $region4: #{tpu_custom_call.1} parent=1 // pred_region
      %16 = vsyncadd [#allocation3], 0
      %s18 = sshll.u32 %s0, 4
      %s19 = int_to_ptr.hbm [resolvable:$true] %s18
      %s20 = sshll.u32 [#allocation2], 4
      %s21 = int_to_ptr.vmem [resolvable:$true] %s20
      %23 = dma.hbm_to_vmem [thread:$0]  %s19, 128, %s21, [#allocation3]
    $region5: #{tpu_custom_call.1} parent=1 // pred_fallthru
      _
    // Predicated region
    $region6: #{tpu_custom_call.1} parent=1 // pred_check
      _
    $region7: #{tpu_custom_call.1} parent=1 // pred_check_branch
      %25 = sbr.rel (0) target = $region9
    $region8: #{tpu_custom_call.1} parent=1 // pred_region
      %27 = vsyncadd [#allocation6], 0
      %s28 = sshll.u32 %s1, 4
      %s29 = int_to_ptr.hbm [resolvable:$true] %s28
      %s30 = sshll.u32 [#allocation5], 4
      %s31 = int_to_ptr.vmem [resolvable:$true] %s30
      %36 = dma.hbm_to_vmem [thread:$0]  %s29, 2048, %s31, [#allocation6], 128, 128, 8
    $region9: #{tpu_custom_call.1} parent=1 // pred_fallthru
      _
    // Predicated region
    $region10: #{tpu_custom_call.1} parent=1 // pred_check
      _
    $region11: #{tpu_custom_call.1} parent=1 // pred_check_branch
      %38 = sbr.rel (0) target = $region13
    $region12: #{tpu_custom_call.1} parent=1 // pred_region
      %40 = vsyncadd [#allocation6], 0
      %s41 = sshll.u32 %s2, 4
      %s42 = int_to_ptr.hbm [resolvable:$true] %s41
      %s43 = sshll.u32 [#allocation7], 4
      %s44 = int_to_ptr.vmem [resolvable:$true] %s43
      %49 = dma.hbm_to_vmem [thread:$0]  %s42, 2048, %s44, [#allocation6], 128, 128, 8
    $region13: #{tpu_custom_call.1} parent=1 // pred_fallthru
      _
    // Predicated region
    $region14: #{tpu_custom_call.1} parent=1 // pred_check
      _
    $region15: #{tpu_custom_call.1} parent=1 // pred_check_branch
      %51 = sbr.rel (0) target = $region17
    $region16: #{tpu_custom_call.1} parent=1 // pred_region
      %53 = vsyncadd [#allocation9], 0
      %s54 = sshll.u32 %s3, 4
      %s55 = int_to_ptr.hbm [resolvable:$true] %s54
      %s56 = sshll.u32 [#allocation8], 4
      %s57 = int_to_ptr.vmem [resolvable:$true] %s56
      %62 = dma.hbm_to_vmem [thread:$0]  %s55, 2048, %s57, [#allocation9], 128, 128, 8
    $region17: #{tpu_custom_call.1} parent=1 // pred_fallthru
      _
    // Predicated region
    $region18: #{tpu_custom_call.1} parent=1 // pred_check
      _
    $region19: #{tpu_custom_call.1} parent=1 // pred_check_branch
      %64 = sbr.rel (0) target = $region21
    $region20: #{tpu_custom_call.1} parent=1 // pred_region
      %66 = dma.done [#allocation3], 128
    $region21: #{tpu_custom_call.1} parent=1 // pred_fallthru
      _
    // Predicated region
    $region22: #{tpu_custom_call.1} parent=1 // pred_check
      _
    $region23: #{tpu_custom_call.1} parent=1 // pred_check_branch
      %68 = sbr.rel (0) target = $region25
    $region24: #{tpu_custom_call.1} parent=1 // pred_region
      %70 = dma.done [#allocation6], 2048
    $region25: #{tpu_custom_call.1} parent=1 // pred_fallthru
      _
    // Predicated region
    $region26: #{tpu_custom_call.1} parent=1 // pred_check
      _
    $region27: #{tpu_custom_call.1} parent=1 // pred_check_branch
      %72 = sbr.rel (0) target = $region29
    $region28: #{tpu_custom_call.1} parent=1 // pred_region
      %74 = dma.done [#allocation6], 2048
    $region29: #{tpu_custom_call.1} parent=1 // pred_fallthru
      _
    // Predicated region
    $region30: #{tpu_custom_call.1} parent=1 // pred_check
      _
    $region31: #{tpu_custom_call.1} parent=1 // pred_check_branch
      %76 = sbr.rel (0) target = $region33
    $region32: #{tpu_custom_call.1} parent=1 // pred_region
      %78 = dma.done [#allocation9], 2048
    $region33: #{tpu_custom_call.1} parent=1 // pred_fallthru
      _
    %v79 = vld [vmem:[#allocation2] sm:$0xff]
    %v80 = vld [vmem:[#allocation5] sm:$0xff]
    %v81 = vld [vmem:[#allocation5 + $0x8] sm:$0xff]
    %v82 = vld [vmem:[#allocation5 + $0x10] sm:$0xff]
    %v83 = vld [vmem:[#allocation5 + $0x18] sm:$0xff]
    %v84 = vld [vmem:[#allocation5 + $0x20] sm:$0xff]
    %v85 = vld [vmem:[#allocation5 + $0x28] sm:$0xff]
    %v86 = vld [vmem:[#allocation5 + $0x30] sm:$0xff]
    %v87 = vld [vmem:[#allocation5 + $0x38] sm:$0xff]
    %v88 = vld [vmem:[#allocation5 + $0x40] sm:$0xff]
    %v89 = vld [vmem:[#allocation5 + $0x48] sm:$0xff]
    %v90 = vld [vmem:[#allocation5 + $0x50] sm:$0xff]
    %v91 = vld [vmem:[#allocation5 + $0x58] sm:$0xff]
    %v92 = vld [vmem:[#allocation5 + $0x60] sm:$0xff]
    %v93 = vld [vmem:[#allocation5 + $0x68] sm:$0xff]
    %v94 = vld [vmem:[#allocation5 + $0x70] sm:$0xff]
    %v95 = vld [vmem:[#allocation5 + $0x78] sm:$0xff]
    %96 = vmatpush.msra.mxu0 %v95
    %97 = vmatpush.msra.mxu0 %v94
    %98 = vmatpush.msra.mxu0 %v93
    %99 = vmatpush.msra.mxu0 %v92
    %100 = vmatpush.msra.mxu0 %v91
    %101 = vmatpush.msra.mxu0 %v90
    %102 = vmatpush.msra.mxu0 %v89
    %103 = vmatpush.msra.mxu0 %v88
    %104 = vmatpush.msra.mxu0 %v87
    %105 = vmatpush.msra.mxu0 %v86
    %106 = vmatpush.msra.mxu0 %v85
    %107 = vmatpush.msra.mxu0 %v84
    %108 = vmatpush.msra.mxu0 %v83
    %109 = vmatpush.msra.mxu0 %v82
    %110 = vmatpush.msra.mxu0 %v81
    %111 = vmatpush.msra.mxu0 %v80
    %112 = vmatmul.f32.gmra.mxu0 %v79
    %v113 = vpop.f32.mrf.mxu0
    %v114 = vadd.f32 0.0, %v113
    %115 = vdwg.mxu0
    %v116 = vld [vmem:[#allocation7] sm:$0xff]
    %v117 = vld [vmem:[#allocation7 + $0x8] sm:$0xff]
    %v118 = vld [vmem:[#allocation7 + $0x10] sm:$0xff]
    %v119 = vld [vmem:[#allocation7 + $0x18] sm:$0xff]
    %v120 = vld [vmem:[#allocation7 + $0x20] sm:$0xff]
    %v121 = vld [vmem:[#allocation7 + $0x28] sm:$0xff]
    %v122 = vld [vmem:[#allocation7 + $0x30] sm:$0xff]
    %v123 = vld [vmem:[#allocation7 + $0x38] sm:$0xff]
    %v124 = vld [vmem:[#allocation7 + $0x40] sm:$0xff]
    %v125 = vld [vmem:[#allocation7 + $0x48] sm:$0xff]
    %v126 = vld [vmem:[#allocation7 + $0x50] sm:$0xff]
    %v127 = vld [vmem:[#allocation7 + $0x58] sm:$0xff]
    %v128 = vld [vmem:[#allocation7 + $0x60] sm:$0xff]
    %v129 = vld [vmem:[#allocation7 + $0x68] sm:$0xff]
    %v130 = vld [vmem:[#allocation7 + $0x70] sm:$0xff]
    %v131 = vld [vmem:[#allocation7 + $0x78] sm:$0xff]
    %132 = vmatpush.msra.mxu0 %v131
    %133 = vmatpush.msra.mxu0 %v130
    %134 = vmatpush.msra.mxu0 %v129
    %135 = vmatpush.msra.mxu0 %v128
    %136 = vmatpush.msra.mxu0 %v127
    %137 = vmatpush.msra.mxu0 %v126
    %138 = vmatpush.msra.mxu0 %v125
    %139 = vmatpush.msra.mxu0 %v124
    %140 = vmatpush.msra.mxu0 %v123
    %141 = vmatpush.msra.mxu0 %v122
    %142 = vmatpush.msra.mxu0 %v121
    %143 = vmatpush.msra.mxu0 %v120
    %144 = vmatpush.msra.mxu0 %v119
    %145 = vmatpush.msra.mxu0 %v118
    %146 = vmatpush.msra.mxu0 %v117
    %147 = vmatpush.msra.mxu0 %v116
    %148 = vmatmul.f32.gmra.mxu0 %v114
    %v149 = vpop.f32.mrf.mxu0
    %v150 = vadd.f32 0.0, %v149
    %151 = vdwg.mxu0
    %v152 = vld [vmem:[#allocation8] sm:$0xff]
    %v153 = vld [vmem:[#allocation8 + $0x8] sm:$0xff]
    %v154 = vld [vmem:[#allocation8 + $0x10] sm:$0xff]
    %v155 = vld [vmem:[#allocation8 + $0x18] sm:$0xff]
    %v156 = vld [vmem:[#allocation8 + $0x20] sm:$0xff]
    %v157 = vld [vmem:[#allocation8 + $0x28] sm:$0xff]
    %v158 = vld [vmem:[#allocation8 + $0x30] sm:$0xff]
    %v159 = vld [vmem:[#allocation8 + $0x38] sm:$0xff]
    %v160 = vld [vmem:[#allocation8 + $0x40] sm:$0xff]
    %v161 = vld [vmem:[#allocation8 + $0x48] sm:$0xff]
    %v162 = vld [vmem:[#allocation8 + $0x50] sm:$0xff]
    %v163 = vld [vmem:[#allocation8 + $0x58] sm:$0xff]
    %v164 = vld [vmem:[#allocation8 + $0x60] sm:$0xff]
    %v165 = vld [vmem:[#allocation8 + $0x68] sm:$0xff]
    %v166 = vld [vmem:[#allocation8 + $0x70] sm:$0xff]
    %v167 = vld [vmem:[#allocation8 + $0x78] sm:$0xff]
    %168 = vmatpush.msra.mxu0 %v167
    %169 = vmatpush.msra.mxu0 %v166
    %170 = vmatpush.msra.mxu0 %v165
    %171 = vmatpush.msra.mxu0 %v164
    %172 = vmatpush.msra.mxu0 %v163
    %173 = vmatpush.msra.mxu0 %v162
    %174 = vmatpush.msra.mxu0 %v161
    %175 = vmatpush.msra.mxu0 %v160
    %176 = vmatpush.msra.mxu0 %v159
    %177 = vmatpush.msra.mxu0 %v158
    %178 = vmatpush.msra.mxu0 %v157
    %179 = vmatpush.msra.mxu0 %v156
    %180 = vmatpush.msra.mxu0 %v155
    %181 = vmatpush.msra.mxu0 %v154
    %182 = vmatpush.msra.mxu0 %v153
    %183 = vmatpush.msra.mxu0 %v152
    %184 = vmatmul.f32.gmra.mxu0 %v150
    %v185 = vpop.f32.mrf.mxu0
    %v186 = vadd.f32 0.0, %v185
    %187 = vdwg.mxu0
    %188 = vst [vmem:[#allocation10] sm:$0xff] %v186
    // Predicated region
    $region34: #{tpu_custom_call.1} parent=1 // pred_check
      _
    $region35: #{tpu_custom_call.1} parent=1 // pred_check_branch
      %190 = sbr.rel (0) target = $region37
    $region36: #{tpu_custom_call.1} parent=1 // pred_region
      %192 = vsyncadd [#allocation4], 0
      %s194 = sshll.u32 [#allocation10], 4
      %s195 = int_to_ptr.vmem [resolvable:$true] %s194
      %s196 = sshll.u32 %s4, 4
      %s197 = int_to_ptr.hbm [resolvable:$true] %s196
      %199 = dma.vmem_to_hbm [thread:$0]  %s195, 128, %s197, [#allocation4]
    $region37: #{tpu_custom_call.1} parent=1 // pred_fallthru
      _
    // Predicated region
    $region38: #{tpu_custom_call.1} parent=1 // pred_check
      _
    $region39: #{tpu_custom_call.1} parent=1 // pred_check_branch
      %201 = sbr.rel (0) target = $region41
    $region40: #{tpu_custom_call.1} parent=1 // pred_region
      %203 = dma.done [#allocation4], 128
    $region41: #{tpu_custom_call.1} parent=1 // pred_fallthru
      _
    %204 = vsyncpa [#allocation3], 1
    %205 = vsyncpa [#allocation6], 1
    %206 = vsyncpa [#allocation9], 1
    %207 = vsyncpa [#allocation4], 1

</llo_original>
